<compile_context>
chip_gen: v7x
topology: tpu7x:2x2x1
jax: 0.10.0
libtpu: 0.0.40
codegen_flags: <defaults>
</compile_context>

<pallas_src>
import jax
import jax.numpy as jnp
from jax.experimental import pallas as pl
from jax.experimental.pallas import tpu as pltpu


def _layer_scale_kernel(x_ref, w_ref, o_ref):
    # x_ref: (T_R, T_HW), w_ref: (T_R, 1), o_ref: (T_R, T_HW)
    # Implicit broadcast of the per-row scale over the lane axis (VPU has huge
    # slack under an HBM-bound roofline).
    o_ref[...] = x_ref[...] * w_ref[...]


def _round_down(v, m):
    return (v // m) * m


def _round_up(v, m):
    return -(-v // m) * m


def layer_scale(x, weight, *, target_block_bytes=4 * 1024 * 1024):
    """x: (B, C, H, W), weight: (C,) -> x * weight[None, :, None, None]."""
    B, C, H, W = x.shape
    assert weight.shape == (C,)

    # Match PyTorch type promotion for the multiply / output dtype.
    out_dtype = jnp.result_type(x.dtype, weight.dtype)
    itemsize = jnp.dtype(out_dtype).itemsize

    # Flatten to a lane-dense 2D problem; fold H into rows if B*C is too small
    # to fill the 8 sublanes of a vreg.
    if B * C >= 8:
        rows, cols = B * C, H * W
        w_rows = jnp.broadcast_to(weight[None, :], (B, C)).reshape(rows, 1)
    else:
        rows, cols = B * C * H, W
        w_rows = jnp.broadcast_to(weight[None, :, None], (B, C, H)).reshape(rows, 1)

    x2 = x.reshape(rows, cols).astype(out_dtype)
    w2 = w_rows.astype(out_dtype)

    full_row_bytes = cols * itemsize
    min_rows = min(rows, 8)

    if min_rows * full_row_bytes <= target_block_bytes:
        # --- Preferred path: full-width (contiguous) row blocks, 1D grid ---
        t_hw = cols
        t_r = max(8, _round_down(target_block_bytes // max(full_row_bytes, 1), 8))
        # Cap t_r so the lane-padded weight block (t_r * 128 * itemsize per
        # buffer) stays small relative to the data blocks.
        t_r = min(t_r, 4096)
        if t_r >= rows:
            t_r = rows
        # v7x megacore: if everything fits in one block but the tensor is
        # large, split the row axis into 2 blocks so both TensorCores work.
        if pl.cdiv(rows, t_r) == 1 and rows >= 16 and rows * full_row_bytes >= (1 << 20):
            half = _round_up(_round_up(rows, 2) // 2, 8)
            if half < rows:
                t_r = half
        grid = (pl.cdiv(rows, t_r),)
        x_spec = pl.BlockSpec((t_r, t_hw), lambda r: (r, 0))
        w_spec = pl.BlockSpec((t_r, 1), lambda r: (r, 0))
        o_spec = pl.BlockSpec((t_r, t_hw), lambda r: (r, 0))
        dims = ("parallel",)
    else:
        # --- Fallback: a single 8-row full-width stripe would blow the block
        # budget (huge cols) -> tile the lane axis too.
        t_r = min_rows
        t_hw = max(128, _round_down(target_block_bytes // (t_r * itemsize), 128))
        t_hw = min(t_hw, cols)
        grid = (pl.cdiv(rows, t_r), pl.cdiv(cols, t_hw))
        x_spec = pl.BlockSpec((t_r, t_hw), lambda r, c: (r, c))
        w_spec = pl.BlockSpec((t_r, 1), lambda r, c: (r, 0))
        o_spec = pl.BlockSpec((t_r, t_hw), lambda r, c: (r, c))
        dims = ("parallel", "parallel")

    # Explicit VMEM accounting: 2 buffers x (x + out) data blocks + 2 buffers
    # of the lane-padded (t_r, 1) -> (t_r, 128) weight block, plus headroom.
    block_bytes = t_r * t_hw * itemsize
    w_block_bytes = t_r * 128 * itemsize
    vmem_needed = 2 * (2 * block_bytes + w_block_bytes) + (2 << 20)
    vmem_limit = int(min(max(vmem_needed, 16 << 20), 32 << 20))

    out = pl.pallas_call(
        _layer_scale_kernel,
        out_shape=jax.ShapeDtypeStruct((rows, cols), out_dtype),
        grid_spec=pltpu.PrefetchScalarGridSpec(
            num_scalar_prefetch=0,
            grid=grid,
            in_specs=[x_spec, w_spec],
            out_specs=o_spec,
        ),
        compiler_params=pltpu.CompilerParams(
            dimension_semantics=dims,
            vmem_limit_bytes=vmem_limit,
        ),
    )(x2, w2)

    return out.reshape(B, C, H, W)


if __name__ == "__main__":
    key = jax.random.PRNGKey(0)
    B, C, H, W = 2, 4, 16, 16
    init_values = 1e-5

    x = jax.random.normal(key, (B, C, H, W), dtype=jnp.float32)
    # nn.Parameter(torch.ones(dim) * init_values)
    weight = jnp.ones((C,), dtype=jnp.float32) * init_values

    out = jax.block_until_ready(layer_scale(x, weight))

    # Reference (same broadcasting as weight.view(-1, 1, 1))
    ref = x * weight.reshape(-1, 1, 1)
    assert out.shape == x.shape
    assert out.dtype == ref.dtype
    assert jnp.allclose(out, ref, rtol=1e-6, atol=0.0)

    print("KERNEL_OK")
</pallas_src>

<mosaic_0001>
module attributes {stable_mosaic.version = 11 : i64} {
  func.func @_layer_scale_kernel(%arg0: i32, %arg1: memref<8x256xf32, #tpu.memory_space<vmem>>, %arg2: memref<8x1xf32, #tpu.memory_space<vmem>>, %arg3: memref<8x256xf32, #tpu.memory_space<vmem>>) attributes {dimension_semantics = [#tpu.dimension_semantics<parallel>], iteration_bounds = array<i64: 1>, scalar_prefetch = 0 : i64, scratch_operands = 0 : i64, tpu.core_type = #tpu.core_type<tc>, window_params = [{transform_indices = @transform_0, window_bounds = array<i64: 8, 256>}, {transform_indices = @transform_1, window_bounds = array<i64: 8, 1>}, {transform_indices = @transform_2, window_bounds = array<i64: 8, 256>}]} {
    %c0 = arith.constant 0 : index
    %c0_0 = arith.constant 0 : index
    %0 = vector.load %arg1[%c0, %c0_0] : memref<8x256xf32, #tpu.memory_space<vmem>>, vector<8x256xf32>
    %c0_1 = arith.constant 0 : index
    %c0_2 = arith.constant 0 : index
    %1 = vector.load %arg2[%c0_1, %c0_2] : memref<8x1xf32, #tpu.memory_space<vmem>>, vector<8x1xf32>
    %2 = vector.broadcast %1 : vector<8x1xf32> to vector<8x256xf32>
    %3 = arith.mulf %0, %2 : vector<8x256xf32>
    %c0_3 = arith.constant 0 : index
    %c0_4 = arith.constant 0 : index
    %4 = vector.load %arg3[%c0_3, %c0_4] : memref<8x256xf32, #tpu.memory_space<vmem>>, vector<8x256xf32>
    tpu.vector_store %arg3[%c0_3, %c0_4], %3 {strides = array<i32>} : memref<8x256xf32, #tpu.memory_space<vmem>>, vector<8x256xf32>,
    return
  }
  func.func @transform_0(%arg0: i32) -> (i32, i32) {
    %c0_i32 = arith.constant 0 : i32
    %c0_i32_0 = arith.constant 0 : i32
    return %arg0, %c0_i32 : i32, i32
  }
  func.func @transform_1(%arg0: i32) -> (i32, i32) {
    %c0_i32 = arith.constant 0 : i32
    %c0_i32_0 = arith.constant 0 : i32
    return %arg0, %c0_i32 : i32, i32
  }
  func.func @transform_2(%arg0: i32) -> (i32, i32) {
    %c0_i32 = arith.constant 0 : i32
    %c0_i32_0 = arith.constant 0 : i32
    return %arg0, %c0_i32 : i32, i32
  }
}

</mosaic_0001>

<llo_original>
// kernel: tpu_custom_call.1
$region0: #{tpu_custom_call.1}
  #allocation0 [shape = 'u32[]', space=smem, size = 0x4, offset = 0x4, fixed_abs, tag = 'smem constant byte address 0x4 - core index']
  #allocation1 [shape = 'u32[144,128]{1,0:T(1,128)}', space=vmem, size = 0x12000, scoped, tag = 'internal scratch']
  %s0 = inlined_call_operand.hbm [shape: f32[8,256], index: 0, kind: input, shape index: {}]
  %s1 = inlined_call_operand.vmem [shape: f32[8,1], index: 1, kind: input, shape index: {}]
  %s2 = inlined_call_operand.hbm [shape: f32[8,256], index: 2, kind: output, shape index: {}]
  %s3 = sld [smem:[#allocation0]]
  $region22: #{tpu_custom_call.1} parent=0
    _
  %s5 = ssub.s32 1, %s3
  %s6 = scalar_select 0, %s5, %s3
  $region1: #{tpu_custom_call.1} parent=0
    #allocation2 [shape = 'u8[8192]{0}', space=vmem, size = 0x2000, scoped, tag = 'input window, operand 0, single buffered']
    #allocation3 [shape = 's32[1]{0}', space=sflag, size = 0x4, scoped, tag = 'scoped memory for tpu_custom_call.1']
    #allocation4 [shape = 's32[1]{0}', space=sflag, size = 0x4, scoped, tag = 'scoped memory for tpu_custom_call.1']
    #allocation5 [shape = 'u8[8192]{0}', space=vmem, size = 0x2000, scoped, tag = 'output window, operand 0, single buffered']
    %7 = vsyncpa [#allocation3], 0
    %8 = vsyncpa [#allocation4], 0
    // Predicated region
    $region2: #{tpu_custom_call.1} parent=1 // pred_check
      _
    $region3: #{tpu_custom_call.1} parent=1 // pred_check_branch
      %10 = sbr.rel (0) target = $region5
    $region4: #{tpu_custom_call.1} parent=1 // pred_region
      %s12 = ssub.s32 256, 256
      %13 = vsyncadd [#allocation3], %s12
      %s15 = sshll.u32 [#allocation2], 4
      %s16 = int_to_ptr.vmem [resolvable:$true] %s15
      %18 = dma.hbm_to_vmem [thread:$0]  %s0, 256, %s16, [#allocation3]
    $region5: #{tpu_custom_call.1} parent=1 // pred_fallthru
      _
    // Predicated region
    $region6: #{tpu_custom_call.1} parent=1 // pred_check
      _
    $region7: #{tpu_custom_call.1} parent=1 // pred_check_branch
      %20 = sbr.rel (0) target = $region9
    $region8: #{tpu_custom_call.1} parent=1 // pred_region
      _
    $region9: #{tpu_custom_call.1} parent=1 // pred_fallthru
      _
    // Predicated region
    $region10: #{tpu_custom_call.1} parent=1 // pred_check
      _
    $region11: #{tpu_custom_call.1} parent=1 // pred_check_branch
      %22 = sbr.rel (0) target = $region13
    $region12: #{tpu_custom_call.1} parent=1 // pred_region
      %23 = dma.done [#allocation3], 256
    $region13: #{tpu_custom_call.1} parent=1 // pred_fallthru
      _
    %v24 = vld [vmem:[#allocation2] sm:$0xff]
    %v25 = vld [vmem:[#allocation2 + $0x8] sm:$0xff]
    %v26 = vld [vmem:[%s1] sm:$0xff]
    %28 = vset.pattern.permute.xlu0 0
    %29 = vperm.xlu0 %28, %v26
    %v30 = vpop.permute.xlu0 %29
    %v32 = vmul.f32 %v24, %v30
    %v33 = vmul.f32 %v25, %v30
    %34 = vst [vmem:[#allocation5] sm:$0xff] %v32
    %35 = vst [vmem:[#allocation5 + $0x8] sm:$0xff] %v33
    // Predicated region
    $region14: #{tpu_custom_call.1} parent=1 // pred_check
      _
    $region15: #{tpu_custom_call.1} parent=1 // pred_check_branch
      %37 = sbr.rel (0) target = $region17
    $region16: #{tpu_custom_call.1} parent=1 // pred_region
      %s39 = ssub.s32 256, 256
      %40 = vsyncadd [#allocation4], %s39
      %s42 = sshll.u32 [#allocation5], 4
      %s43 = int_to_ptr.vmem [resolvable:$true] %s42
      %45 = dma.vmem_to_hbm [thread:$0]  %s43, 256, %s2, [#allocation4]
    $region17: #{tpu_custom_call.1} parent=1 // pred_fallthru
      _
    // Predicated region
    $region18: #{tpu_custom_call.1} parent=1 // pred_check
      _
    $region19: #{tpu_custom_call.1} parent=1 // pred_check_branch
      %47 = sbr.rel (0) target = $region21
    $region20: #{tpu_custom_call.1} parent=1 // pred_region
      %48 = dma.done [#allocation4], 256
    $region21: #{tpu_custom_call.1} parent=1 // pred_fallthru
      _
    %49 = vsyncpa [#allocation3], 1
    %50 = vsyncpa [#allocation4], 1

</llo_original>
